<compile_context>
chip_gen: v7x
topology: tpu7x:2x2x1
jax: 0.10.0
libtpu: 0.0.40
codegen_flags: <defaults>
</compile_context>

<pallas_src>
import jax
import jax.numpy as jnp
from jax.experimental import pallas as pl
from jax.experimental.pallas import tpu as pltpu


def tlu_kernel(x_ref, tau_ref, o_ref):
    # x_ref: (TR, TL) tile; tau_ref: (TR, 1) (layout A) or (1, TL) (layout B).
    # Broadcasting the threshold is a plain VPU op either way.
    o_ref[...] = jnp.maximum(x_ref[...], tau_ref[...])


def _pick_tile(dim, align, max_tile):
    """Pick an `align`-aligned block size for an axis of extent `dim`.

    Returns `dim` itself if it fits `max_tile` (a full-extent block is always
    legal).  Otherwise prefers the largest aligned divisor of `dim` (so every
    block DMA/store is unmasked); if no aligned divisor exists, picks the
    aligned tile that minimizes masked tail work.
    """
    if dim <= max_tile:
        return dim
    t_max = max((max_tile // align) * align, align)
    # Exact divisors first -> no ragged tail at all.
    for cand in range(t_max, 0, -align):
        if dim % cand == 0:
            return cand
    # No aligned divisor: minimize wasted (masked) elements in the tail block.
    best, best_waste = align, None
    for cand in range(align, t_max + 1, align):
        waste = pl.cdiv(dim, cand) * cand - dim
        if best_waste is None or waste < best_waste or (waste == best_waste and cand > best):
            best, best_waste = cand, waste
    return best


def tlu_forward(x_nchw, tau, *, donate_x=False):
    """x_nchw: (N, C, H, W); tau: (1, C, 1, 1). Returns max(x, tau), NCHW.

    Note: tau is cast to x.dtype before the compare (with bf16 activations the
    threshold is quantized to bf16 — tiny deviation from comparing against an
    f32 parameter).
    """
    N, C, H, W = x_nchw.shape
    hw = H * W
    itemsize = jnp.dtype(x_nchw.dtype).itemsize
    sub = max(8, 32 // itemsize)          # sublane group: 8 f32 / 16 bf16 / 32 int8

    # ---- layout selection -------------------------------------------------
    use_row_per_nc = (hw % 128 == 0) and hw >= 128
    if use_row_per_nc:
        # Layout A: (N*C, H*W); one threshold scalar per row.
        rows, lanes = N * C, hw
        x2d = x_nchw.reshape(rows, lanes)
        tau2d = jnp.tile(tau.reshape(C), N).reshape(rows, 1).astype(x_nchw.dtype)
    else:
        # Layout B: (N, C*H*W); tau expanded to a lane vector (read once per
        # lane column, negligible HBM bytes) so small/unaligned spatial dims
        # still fill the 128-lane vregs.
        rows, lanes = N, C * hw
        x2d = x_nchw.reshape(rows, lanes)
        tau2d = jnp.repeat(tau.reshape(C), hw).reshape(1, lanes).astype(x_nchw.dtype)

    # ---- tile selection ---------------------------------------------------
    budget = 2 * 1024 * 1024              # bytes of x per tile; safe on v5e/v6e/v7x
    if lanes <= 128 or lanes * sub * itemsize <= budget:
        # A sublane-group of full rows fits: take full-extent lane tiles
        # (one contiguous HBM DMA per block) and grow the row count instead.
        tl = lanes
    else:
        tl = _pick_tile(lanes, 128, budget // (sub * itemsize))
    tr_max = max(sub, budget // max(1, tl * itemsize))
    if rows > sub:
        # v7x megacore: keep >= 2 row blocks so the "parallel" row axis can be
        # split across both TensorCores (irrelevant on 1-TC v5e/v6e).
        tr_max = min(tr_max, max(sub, rows // 2))
    tr = _pick_tile(rows, sub, tr_max)

    grid = (pl.cdiv(rows, tr), pl.cdiv(lanes, tl))

    if use_row_per_nc:
        # Same tau block while j varies -> stays VMEM-resident.
        tau_spec = pl.BlockSpec((tr, 1), lambda i, j: (i, 0))
    else:
        # Same tau block while i varies -> stays VMEM-resident.
        tau_spec = pl.BlockSpec((1, tl), lambda i, j: (0, j))

    out2d = pl.pallas_call(
        tlu_kernel,
        out_shape=jax.ShapeDtypeStruct((rows, lanes), x_nchw.dtype),
        grid=grid,
        in_specs=[
            pl.BlockSpec((tr, tl), lambda i, j: (i, j)),
            tau_spec,
        ],
        out_specs=pl.BlockSpec((tr, tl), lambda i, j: (i, j)),
        compiler_params=pltpu.CompilerParams(
            dimension_semantics=("parallel", "parallel")
        ),
        # Optional: the output fully overwrites the same extent, so x's buffer
        # can be reused (drops one full-size activation allocation under jit
        # with donation; XLA copies automatically if x is still live).
        input_output_aliases={0: 0} if donate_x else {},
    )(x2d, tau2d)

    return out2d.reshape(N, C, H, W)


if __name__ == "__main__":
    key = jax.random.PRNGKey(0)
    kx, kt, kx2 = jax.random.split(key, 3)

    # Main shape (layout A path: H*W multiple of 128).
    N, C, H, W = 2, 4, 16, 16
    x = jax.random.normal(kx, (N, C, H, W), dtype=jnp.float32)

    # Deterministic parameter init, matching TLU.reset_parameters (zeros).
    tau = jnp.zeros((1, C, 1, 1), dtype=jnp.float32)
    y = jax.block_until_ready(tlu_forward(x, tau))
    assert y.shape == (N, C, H, W)
    assert jnp.allclose(y, jnp.maximum(x, tau)), "mismatch vs reference (zero tau)"

    # Non-trivial per-channel thresholds (exercises the per-row broadcast).
    tau2 = jax.random.normal(kt, (1, C, 1, 1), dtype=jnp.float32)
    y2 = jax.block_until_ready(tlu_forward(x, tau2))
    assert jnp.allclose(y2, jnp.maximum(x, tau2)), "mismatch vs reference (random tau)"

    # Small / non-128-aligned spatial dims (exercises the layout-B path).
    Hs = Ws = 7
    xs = jax.random.normal(kx2, (N, C, Hs, Ws), dtype=jnp.float32)
    y3 = jax.block_until_ready(tlu_forward(xs, tau2))
    assert jnp.allclose(y3, jnp.maximum(xs, tau2)), "mismatch vs reference (7x7)"

    print("KERNEL_OK")
</pallas_src>

<mosaic_0001>
module attributes {stable_mosaic.version = 11 : i64} {
  func.func @tlu_kernel(%arg0: i32, %arg1: i32, %arg2: memref<8x256xf32, #tpu.memory_space<vmem>>, %arg3: memref<8x1xf32, #tpu.memory_space<vmem>>, %arg4: memref<8x256xf32, #tpu.memory_space<vmem>>) attributes {dimension_semantics = [#tpu.dimension_semantics<parallel>, #tpu.dimension_semantics<parallel>], iteration_bounds = array<i64: 1, 1>, scalar_prefetch = 0 : i64, scratch_operands = 0 : i64, tpu.core_type = #tpu.core_type<tc>, window_params = [{transform_indices = @transform_0, window_bounds = array<i64: 8, 256>}, {transform_indices = @transform_1, window_bounds = array<i64: 8, 1>}, {transform_indices = @transform_2, window_bounds = array<i64: 8, 256>}]} {
    %c0 = arith.constant 0 : index
    %c0_0 = arith.constant 0 : index
    %0 = vector.load %arg2[%c0, %c0_0] : memref<8x256xf32, #tpu.memory_space<vmem>>, vector<8x256xf32>
    %c0_1 = arith.constant 0 : index
    %c0_2 = arith.constant 0 : index
    %1 = vector.load %arg3[%c0_1, %c0_2] : memref<8x1xf32, #tpu.memory_space<vmem>>, vector<8x1xf32>
    %2 = vector.broadcast %1 : vector<8x1xf32> to vector<8x256xf32>
    %3 = arith.maximumf %0, %2 : vector<8x256xf32>
    %c0_3 = arith.constant 0 : index
    %c0_4 = arith.constant 0 : index
    %4 = vector.load %arg4[%c0_3, %c0_4] : memref<8x256xf32, #tpu.memory_space<vmem>>, vector<8x256xf32>
    tpu.vector_store %arg4[%c0_3, %c0_4], %3 {strides = array<i32>} : memref<8x256xf32, #tpu.memory_space<vmem>>, vector<8x256xf32>,
    return
  }
  func.func @transform_0(%arg0: i32, %arg1: i32) -> (i32, i32) {
    %c0_i32 = arith.constant 0 : i32
    return %arg0, %arg1 : i32, i32
  }
  func.func @transform_1(%arg0: i32, %arg1: i32) -> (i32, i32) {
    %c0_i32 = arith.constant 0 : i32
    %c0_i32_0 = arith.constant 0 : i32
    return %arg0, %c0_i32 : i32, i32
  }
  func.func @transform_2(%arg0: i32, %arg1: i32) -> (i32, i32) {
    %c0_i32 = arith.constant 0 : i32
    return %arg0, %arg1 : i32, i32
  }
}

</mosaic_0001>

<llo_original>
// kernel: tpu_custom_call.1
$region0: #{tpu_custom_call.1}
  #allocation0 [shape = 'u32[]', space=smem, size = 0x4, offset = 0x4, fixed_abs, tag = 'smem constant byte address 0x4 - core index']
  #allocation1 [shape = 'u32[144,128]{1,0:T(1,128)}', space=vmem, size = 0x12000, scoped, tag = 'internal scratch']
  %s0 = inlined_call_operand.hbm [shape: f32[8,256], index: 0, kind: input, shape index: {}]
  %s1 = inlined_call_operand.vmem [shape: f32[8,1], index: 1, kind: input, shape index: {}]
  %s2 = inlined_call_operand.hbm [shape: f32[8,256], index: 2, kind: output, shape index: {}]
  %s3 = sld [smem:[#allocation0]]
  $region22: #{tpu_custom_call.1} parent=0
    _
  %s5 = ssub.s32 1, %s3
  %s6 = scalar_select 0, %s5, %s3
  $region1: #{tpu_custom_call.1} parent=0
    #allocation2 [shape = 'u8[8192]{0}', space=vmem, size = 0x2000, scoped, tag = 'input window, operand 0, single buffered']
    #allocation3 [shape = 's32[1]{0}', space=sflag, size = 0x4, scoped, tag = 'scoped memory for tpu_custom_call.1']
    #allocation4 [shape = 's32[1]{0}', space=sflag, size = 0x4, scoped, tag = 'scoped memory for tpu_custom_call.1']
    #allocation5 [shape = 'u8[8192]{0}', space=vmem, size = 0x2000, scoped, tag = 'output window, operand 0, single buffered']
    %7 = vsyncpa [#allocation3], 0
    %8 = vsyncpa [#allocation4], 0
    // Predicated region
    $region2: #{tpu_custom_call.1} parent=1 // pred_check
      _
    $region3: #{tpu_custom_call.1} parent=1 // pred_check_branch
      %10 = sbr.rel (0) target = $region5
    $region4: #{tpu_custom_call.1} parent=1 // pred_region
      %s12 = ssub.s32 256, 256
      %13 = vsyncadd [#allocation3], %s12
      %s15 = sshll.u32 [#allocation2], 4
      %s16 = int_to_ptr.vmem [resolvable:$true] %s15
      %18 = dma.hbm_to_vmem [thread:$0]  %s0, 256, %s16, [#allocation3]
    $region5: #{tpu_custom_call.1} parent=1 // pred_fallthru
      _
    // Predicated region
    $region6: #{tpu_custom_call.1} parent=1 // pred_check
      _
    $region7: #{tpu_custom_call.1} parent=1 // pred_check_branch
      %20 = sbr.rel (0) target = $region9
    $region8: #{tpu_custom_call.1} parent=1 // pred_region
      _
    $region9: #{tpu_custom_call.1} parent=1 // pred_fallthru
      _
    // Predicated region
    $region10: #{tpu_custom_call.1} parent=1 // pred_check
      _
    $region11: #{tpu_custom_call.1} parent=1 // pred_check_branch
      %22 = sbr.rel (0) target = $region13
    $region12: #{tpu_custom_call.1} parent=1 // pred_region
      %23 = dma.done [#allocation3], 256
    $region13: #{tpu_custom_call.1} parent=1 // pred_fallthru
      _
    %v24 = vld [vmem:[#allocation2] sm:$0xff]
    %v25 = vld [vmem:[#allocation2 + $0x8] sm:$0xff]
    %v26 = vld [vmem:[%s1] sm:$0xff]
    %28 = vset.pattern.permute.xlu0 0
    %29 = vperm.xlu0 %28, %v26
    %v30 = vpop.permute.xlu0 %29
    %v32 = vmax.f32 %v24, %v30
    %v33 = vmax.f32 %v25, %v30
    %34 = vst [vmem:[#allocation5] sm:$0xff] %v32
    %35 = vst [vmem:[#allocation5 + $0x8] sm:$0xff] %v33
    // Predicated region
    $region14: #{tpu_custom_call.1} parent=1 // pred_check
      _
    $region15: #{tpu_custom_call.1} parent=1 // pred_check_branch
      %37 = sbr.rel (0) target = $region17
    $region16: #{tpu_custom_call.1} parent=1 // pred_region
      %s39 = ssub.s32 256, 256
      %40 = vsyncadd [#allocation4], %s39
      %s42 = sshll.u32 [#allocation5], 4
      %s43 = int_to_ptr.vmem [resolvable:$true] %s42
      %45 = dma.vmem_to_hbm [thread:$0]  %s43, 256, %s2, [#allocation4]
    $region17: #{tpu_custom_call.1} parent=1 // pred_fallthru
      _
    // Predicated region
    $region18: #{tpu_custom_call.1} parent=1 // pred_check
      _
    $region19: #{tpu_custom_call.1} parent=1 // pred_check_branch
      %47 = sbr.rel (0) target = $region21
    $region20: #{tpu_custom_call.1} parent=1 // pred_region
      %48 = dma.done [#allocation4], 256
    $region21: #{tpu_custom_call.1} parent=1 // pred_fallthru
      _
    %49 = vsyncpa [#allocation3], 1
    %50 = vsyncpa [#allocation4], 1

</llo_original>
